<compile_context>
chip_gen: v5e
topology: v5e:2x2
jax: 0.10.0
libtpu: 0.0.40
codegen_flags: <defaults>
</compile_context>

<pallas_src>
import jax
import jax.numpy as jnp
from jax.experimental import pallas as pl
from jax.experimental.pallas import tpu as pltpu


def _round_up(x, m):
    return ((x + m - 1) // m) * m


# -----------------------------------------------------------------------------
# Generic tiled matmul + bias:  y = x @ w + b   (f32 accumulation on the MXU)
# Used for the hoisted input projection (Phase A) and vocab projection (Phase C)
# -----------------------------------------------------------------------------
def _matmul_bias_kernel(x_ref, w_ref, b_ref, o_ref, acc_ref):
    @pl.when(pl.program_id(2) == 0)
    def _():
        acc_ref[...] = jnp.zeros_like(acc_ref)

    acc_ref[...] += jnp.dot(x_ref[...], w_ref[...],
                            preferred_element_type=jnp.float32)

    @pl.when(pl.program_id(2) == pl.num_programs(2) - 1)
    def _():
        o_ref[...] = (acc_ref[...] + b_ref[...].astype(jnp.float32)
                      ).astype(o_ref.dtype)


def matmul_bias_pallas(x, w, b, *, out_dtype=jnp.float32,
                       tm_cap=256, tk_cap=512, tn_cap=512):
    """x: (M, K), w: (K, N), b: (1, N) -> (M, N). Pads to tile multiples."""
    M, K = x.shape
    K2, N = w.shape
    assert K == K2

    def pick(dim, base, cap):
        p = _round_up(dim, base)
        if p <= cap:
            return p, p
        return cap, _round_up(p, cap)

    tm, Mp = pick(M, 16, tm_cap)    # 16: bf16 sublane packing
    tk, Kp = pick(K, 128, tk_cap)
    tn, Np = pick(N, 128, tn_cap)

    xp = jnp.pad(x, ((0, Mp - M), (0, Kp - K)))
    wp = jnp.pad(w, ((0, Kp - K), (0, Np - N)))
    bp = jnp.pad(b, ((0, 0), (0, Np - N)))

    out = pl.pallas_call(
        _matmul_bias_kernel,
        out_shape=jax.ShapeDtypeStruct((Mp, Np), out_dtype),
        grid_spec=pltpu.PrefetchScalarGridSpec(
            num_scalar_prefetch=0,
            grid=(Mp // tm, Np // tn, Kp // tk),
            in_specs=[
                pl.BlockSpec((tm, tk), lambda i, j, k: (i, k)),
                pl.BlockSpec((tk, tn), lambda i, j, k: (k, j)),
                pl.BlockSpec((1, tn), lambda i, j, k: (0, j)),
            ],
            out_specs=pl.BlockSpec((tm, tn), lambda i, j, k: (i, j)),
            scratch_shapes=[pltpu.VMEM((tm, tn), jnp.float32)],
        ),
        compiler_params=pltpu.CompilerParams(
            dimension_semantics=("parallel", "parallel", "arbitrary"),
            vmem_limit_bytes=32 * 1024 * 1024,
        ),
    )(xp, wp, bp)
    return out[:M, :N]


# -----------------------------------------------------------------------------
# LSTM recurrence: grid over T, h/c persist in VMEM scratch across grid steps.
# gx_ref already contains x_t @ W_ih + b (hoisted), so only h @ W_hh is serial.
# Gate slabs are Hp(=128)-lane aligned; gate padding columns stay exactly zero.
# -----------------------------------------------------------------------------
def _lstm_recurrence_kernel(gx_ref,     # (1, Bp, 4Hp) f32 block for timestep t
                            w_hh_ref,   # (Hp, 4Hp)    bf16 (resident)
                            h_out_ref,  # (1, Bp, Hp)  f32 block for timestep t
                            h_scr,      # (Bp, Hp)     f32 scratch
                            c_scr):     # (Bp, Hp)     f32 scratch
    Hp = h_scr.shape[-1]

    @pl.when(pl.program_id(0) == 0)
    def _():                           # init_hidden: h0 = c0 = 0
        h_scr[...] = jnp.zeros_like(h_scr)
        c_scr[...] = jnp.zeros_like(c_scr)

    h_prev = h_scr[...]
    gates = gx_ref[0] + jnp.dot(h_prev.astype(w_hh_ref.dtype), w_hh_ref[...],
                                preferred_element_type=jnp.float32)   # (Bp,4Hp)

    i_g = jax.nn.sigmoid(gates[:, 0 * Hp:1 * Hp])   # lane-aligned slabs
    f_g = jax.nn.sigmoid(gates[:, 1 * Hp:2 * Hp])
    g_g = jnp.tanh(gates[:, 2 * Hp:3 * Hp])
    o_g = jax.nn.sigmoid(gates[:, 3 * Hp:4 * Hp])

    c_new = f_g * c_scr[...] + i_g * g_g
    h_new = o_g * jnp.tanh(c_new)

    h_scr[...] = h_new
    c_scr[...] = c_new
    h_out_ref[0] = h_new


def lstm_recurrence_pallas(gx, w_hh_p):
    """gx: (T, Bp, 4Hp) f32 ; w_hh_p: (Hp, 4Hp) bf16 -> hidden (T, Bp, Hp) f32."""
    T, Bp, fourHp = gx.shape
    Hp = fourHp // 4
    return pl.pallas_call(
        _lstm_recurrence_kernel,
        out_shape=jax.ShapeDtypeStruct((T, Bp, Hp), jnp.float32),
        grid_spec=pltpu.PrefetchScalarGridSpec(
            num_scalar_prefetch=0,
            grid=(T,),
            in_specs=[
                pl.BlockSpec((1, Bp, fourHp), lambda t: (t, 0, 0)),
                pl.BlockSpec((Hp, fourHp), lambda t: (0, 0)),
            ],
            out_specs=pl.BlockSpec((1, Bp, Hp), lambda t: (t, 0, 0)),
            scratch_shapes=[pltpu.VMEM((Bp, Hp), jnp.float32),   # h
                            pltpu.VMEM((Bp, Hp), jnp.float32)],  # c
        ),
        compiler_params=pltpu.CompilerParams(
            dimension_semantics=("arbitrary",),     # serial recurrence
            vmem_limit_bytes=32 * 1024 * 1024,
        ),
    )(gx, w_hh_p)


def _pad_gate_cols(w, H, Hp):
    """(rows, 4H) -> (rows, 4Hp): each gate gets its own lane-aligned Hp slab."""
    if Hp == H:
        return w
    rows = w.shape[0]
    out = jnp.zeros((rows, 4 * Hp), w.dtype)
    for g in range(4):
        out = out.at[:, g * Hp:g * Hp + H].set(w[:, g * H:(g + 1) * H])
    return out


# -----------------------------------------------------------------------------
# DecoderRNN module (parameters + forward)
# -----------------------------------------------------------------------------
class DecoderRNNPallas:
    def __init__(self, word_embed_size, image_emb_size, hidden_size, vocab_size,
                 num_layers=1, key=None):
        assert num_layers == 1, "kernel implements num_layers=1 (as used)"
        self.word_embed_size = word_embed_size
        self.image_emb_size = image_emb_size
        self.hidden_size = hidden_size
        self.vocab_size = vocab_size

        key = jax.random.PRNGKey(0) if key is None else key
        ks = jax.random.split(key, 6)
        D_in = word_embed_size + image_emb_size
        H = hidden_size
        Hp = _round_up(H, 128)          # lane-aligned gate slab width
        self.Hp = Hp
        k = 1.0 / (H ** 0.5)

        # nn.Embedding(vocab, word_embed): N(0, 1)
        self.embedding = jax.random.normal(ks[0], (vocab_size, word_embed_size),
                                           jnp.float32)
        # nn.LSTM params (PyTorch gate order i,f,g,o), uniform(-1/sqrt(H), 1/sqrt(H))
        w_ih = jax.random.uniform(ks[1], (4 * H, D_in), jnp.float32, -k, k)
        w_hh = jax.random.uniform(ks[2], (4 * H, H), jnp.float32, -k, k)
        b_ih = jax.random.uniform(ks[3], (4 * H,), jnp.float32, -k, k)
        b_hh = jax.random.uniform(ks[4], (4 * H,), jnp.float32, -k, k)
        # nn.Linear(H, vocab): init_weights() -> weight ~ N(0, 0.02), bias = 0
        w_lin = 0.02 * jax.random.normal(ks[5], (vocab_size, H), jnp.float32)
        b_lin = jnp.zeros((vocab_size,), jnp.float32)

        # bf16 weight storage (halves VMEM for w_out, bf16-native MXU), f32 biases.
        w_ih_t_bf = jnp.asarray(w_ih.T, jnp.bfloat16)        # (D_in, 4H)
        w_hh_t_bf = jnp.asarray(w_hh.T, jnp.bfloat16)        # (H, 4H)
        w_out_t_bf = jnp.asarray(w_lin.T, jnp.bfloat16)      # (H, V)
        b_gates = (b_ih + b_hh).reshape(1, 4 * H).astype(jnp.float32)

        # f32 copies of the (bf16-rounded) weights for the pure-JAX reference.
        self.w_ih_t_ref = w_ih_t_bf.astype(jnp.float32)
        self.w_hh_t_ref = w_hh_t_bf.astype(jnp.float32)
        self.b_gates_ref = b_gates
        self.w_out_t_ref = w_out_t_bf.astype(jnp.float32)
        self.b_out_ref = b_lin.reshape(1, vocab_size)

        # Kernel weights: gate columns padded to Hp-wide lane-aligned slabs,
        # H rows padded to Hp (padding stays exactly zero through the recurrence).
        self.w_ih_p = _pad_gate_cols(w_ih_t_bf, H, Hp)                    # (D_in,4Hp)
        self.w_hh_p = jnp.pad(_pad_gate_cols(w_hh_t_bf, H, Hp),
                              ((0, Hp - H), (0, 0)))                      # (Hp, 4Hp)
        self.b_gates_p = _pad_gate_cols(b_gates, H, Hp)                   # (1, 4Hp)
        self.w_out_p = jnp.pad(w_out_t_bf, ((0, Hp - H), (0, 0)))         # (Hp, V)
        self.b_out_p = self.b_out_ref                                     # (1, V)

    def forward(self, features, captions):
        """features: (B, image_emb_size) f32 ; captions: (B, T) int32
        returns logits (B, T, vocab_size) f32  (matches PyTorch `out`)."""
        B, T = captions.shape
        V, Hp = self.vocab_size, self.Hp
        Bp = _round_up(max(B, 8), 8)          # sublane-aligned batch

        # Glue: embedding lookup, feature broadcast over time, concat.
        embeddings = jnp.take(self.embedding, captions, axis=0)          # (B,T,We)
        feats = jnp.broadcast_to(features[:, None, :],
                                 (B, T, self.image_emb_size))            # (B,T,Wi)
        x = jnp.concatenate((feats, embeddings), axis=2)                 # (B,T,D)
        D_in = x.shape[-1]

        # Time-major, batch-padded (cheap: D_in << V).
        x_tb = jnp.transpose(x, (1, 0, 2))                               # (T,B,D)
        x_tb = jnp.pad(x_tb, ((0, 0), (0, Bp - B), (0, 0)))              # (T,Bp,D)

        # Phase A: hoisted input projection as one big MXU matmul.
        gx = matmul_bias_pallas(
            x_tb.reshape(T * Bp, D_in).astype(jnp.bfloat16),
            self.w_ih_p, self.b_gates_p, out_dtype=jnp.float32)          # (T*Bp,4Hp)
        gx = gx.reshape(T, Bp, 4 * Hp)

        # Phase B: serial LSTM recurrence (grid over T, h/c in VMEM scratch).
        h_seq = lstm_recurrence_pallas(gx, self.w_hh_p)                  # (T,Bp,Hp)

        # Phase C: one big vocab projection, emitted batch-first so the large
        # logits array never needs a transpose (only the small hidden does).
        h_bt = jnp.transpose(h_seq, (1, 0, 2)).reshape(Bp * T, Hp)
        logits = matmul_bias_pallas(
            h_bt.astype(jnp.bfloat16), self.w_out_p, self.b_out_p,
            out_dtype=jnp.float32)                                       # (Bp*T,V)
        out = logits.reshape(Bp, T, V)[:B]                               # (B,T,V)

        # TODO(synk): Dropout2d(p=0.5) is identity here (eval semantics); the
        # training-mode channel mask is not implemented.
        _predicted = jnp.argmax(out, axis=2)  # computed in PyTorch but unused
        return out


# -----------------------------------------------------------------------------
# Pure-JAX reference (f32 math, same bf16-rounded weights) for a sanity check.
# -----------------------------------------------------------------------------
def _reference_forward(model, features, captions):
    B, T = captions.shape
    H = model.hidden_size
    emb = jnp.take(model.embedding, captions, axis=0)
    feats = jnp.broadcast_to(features[:, None, :], (B, T, model.image_emb_size))
    x = jnp.concatenate((feats, emb), axis=2)

    def step(carry, x_t):
        h, c = carry
        gates = x_t @ model.w_ih_t_ref + h @ model.w_hh_t_ref + model.b_gates_ref
        i = jax.nn.sigmoid(gates[:, 0 * H:1 * H])
        f = jax.nn.sigmoid(gates[:, 1 * H:2 * H])
        g = jnp.tanh(gates[:, 2 * H:3 * H])
        o = jax.nn.sigmoid(gates[:, 3 * H:4 * H])
        c = f * c + i * g
        h = o * jnp.tanh(c)
        return (h, c), h

    h0 = jnp.zeros((B, H), jnp.float32)
    c0 = jnp.zeros((B, H), jnp.float32)
    _, hs = jax.lax.scan(step, (h0, c0), jnp.transpose(x, (1, 0, 2)))
    hs = jnp.transpose(hs, (1, 0, 2))                                    # (B,T,H)
    return hs @ model.w_out_t_ref + model.b_out_ref


if __name__ == "__main__":
    batch = 2
    seq = 8
    word_embed_size = 16
    image_emb_size = 16
    hidden_size = 32
    vocab_size = 128

    key = jax.random.PRNGKey(0)
    k_feat, k_cap, k_params = jax.random.split(key, 3)

    features = jax.random.normal(k_feat, (batch, image_emb_size), jnp.float32)
    captions = jax.random.randint(k_cap, (batch, seq), 0, vocab_size,
                                  dtype=jnp.int32)

    model = DecoderRNNPallas(word_embed_size, image_emb_size, hidden_size,
                             vocab_size, num_layers=1, key=k_params)

    out = jax.block_until_ready(model.forward(features, captions))
    ref = jax.block_until_ready(_reference_forward(model, features, captions))

    assert out.shape == (batch, seq, vocab_size)
    assert jnp.allclose(out, ref, atol=2e-2, rtol=2e-2), "mismatch vs reference"

    print("KERNEL_OK")
</pallas_src>

<mosaic_0001>
module attributes {stable_mosaic.version = 11 : i64} {
  func.func @_matmul_bias_kernel(%arg0: i32, %arg1: i32, %arg2: i32, %arg3: memref<64x128xbf16, #tpu.memory_space<vmem>>, %arg4: memref<128x512xbf16, #tpu.memory_space<vmem>>, %arg5: memref<1x512xf32, #tpu.memory_space<vmem>>, %arg6: memref<64x512xf32, #tpu.memory_space<vmem>>, %arg7: memref<64x512xf32, #tpu.memory_space<vmem>>) attributes {dimension_semantics = [#tpu.dimension_semantics<parallel>, #tpu.dimension_semantics<parallel>, #tpu.dimension_semantics<arbitrary>], iteration_bounds = array<i64: 1, 1, 1>, scalar_prefetch = 0 : i64, scratch_operands = 1 : i64, tpu.core_type = #tpu.core_type<tc>, window_params = [{transform_indices = @transform_0, window_bounds = array<i64: 64, 128>}, {transform_indices = @transform_1, window_bounds = array<i64: 128, 512>}, {transform_indices = @transform_2, window_bounds = array<i64: 1, 512>}, {transform_indices = @transform_3, window_bounds = array<i64: 64, 512>}]} {
    %c0_i32 = arith.constant 0 : i32
    %0 = arith.cmpi eq, %arg2, %c0_i32 : i32
    %1 = arith.extui %0 : i1 to i32
    %c0_i32_0 = arith.constant 0 : i32
    %2 = arith.cmpi ne, %1, %c0_i32_0 : i32
    scf.if %2 {
      %cst_10 = arith.constant 0.000000e+00 : f32
      %12 = vector.broadcast %cst_10 : f32 to vector<64x512xf32>
      %c0_11 = arith.constant 0 : index
      %c0_12 = arith.constant 0 : index
      %13 = vector.load %arg7[%c0_11, %c0_12] : memref<64x512xf32, #tpu.memory_space<vmem>>, vector<64x512xf32>
      tpu.vector_store %arg7[%c0_11, %c0_12], %12 {strides = array<i32>} : memref<64x512xf32, #tpu.memory_space<vmem>>, vector<64x512xf32>,
    } else {
    }
    %c0 = arith.constant 0 : index
    %c0_1 = arith.constant 0 : index
    %3 = vector.load %arg7[%c0, %c0_1] : memref<64x512xf32, #tpu.memory_space<vmem>>, vector<64x512xf32>
    %c0_2 = arith.constant 0 : index
    %c0_3 = arith.constant 0 : index
    %4 = vector.load %arg3[%c0_2, %c0_3] : memref<64x128xbf16, #tpu.memory_space<vmem>>, vector<64x128xbf16>
    %c0_4 = arith.constant 0 : index
    %c0_5 = arith.constant 0 : index
    %5 = vector.load %arg4[%c0_4, %c0_5] : memref<128x512xbf16, #tpu.memory_space<vmem>>, vector<128x512xbf16>
    %cst = arith.constant dense<0.000000e+00> : vector<64x512xf32>
    %6 = tpu.matmul %4, %5, %cst {dimension_numbers = #tpu.dot_dimension_numbers<[1], [0], [0], [1], [0, 0, 1, 1], [], []>} : vector<64x128xbf16>, vector<128x512xbf16>, vector<64x512xf32> -> vector<64x512xf32>
    %7 = arith.addf %3, %6 : vector<64x512xf32>
    %c0_6 = arith.constant 0 : index
    %c0_7 = arith.constant 0 : index
    %8 = vector.load %arg7[%c0_6, %c0_7] : memref<64x512xf32, #tpu.memory_space<vmem>>, vector<64x512xf32>
    tpu.vector_store %arg7[%c0_6, %c0_7], %7 {strides = array<i32>} : memref<64x512xf32, #tpu.memory_space<vmem>>, vector<64x512xf32>,
    %c0_i32_8 = arith.constant 0 : i32
    %9 = arith.cmpi eq, %arg2, %c0_i32_8 : i32
    %10 = arith.extui %9 : i1 to i32
    %c0_i32_9 = arith.constant 0 : i32
    %11 = arith.cmpi ne, %10, %c0_i32_9 : i32
    scf.if %11 {
      %c0_10 = arith.constant 0 : index
      %c0_11 = arith.constant 0 : index
      %12 = vector.load %arg7[%c0_10, %c0_11] : memref<64x512xf32, #tpu.memory_space<vmem>>, vector<64x512xf32>
      %c0_12 = arith.constant 0 : index
      %c0_13 = arith.constant 0 : index
      %13 = vector.load %arg5[%c0_12, %c0_13] : memref<1x512xf32, #tpu.memory_space<vmem>>, vector<1x512xf32>
      %14 = vector.broadcast %13 : vector<1x512xf32> to vector<64x512xf32>
      %15 = arith.addf %12, %14 : vector<64x512xf32>
      %c0_14 = arith.constant 0 : index
      %c0_15 = arith.constant 0 : index
      %16 = vector.load %arg6[%c0_14, %c0_15] : memref<64x512xf32, #tpu.memory_space<vmem>>, vector<64x512xf32>
      tpu.vector_store %arg6[%c0_14, %c0_15], %15 {strides = array<i32>} : memref<64x512xf32, #tpu.memory_space<vmem>>, vector<64x512xf32>,
    } else {
    }
    return
  }
  func.func @transform_0(%arg0: i32, %arg1: i32, %arg2: i32) -> (i32, i32) {
    %c0_i32 = arith.constant 0 : i32
    return %arg0, %arg2 : i32, i32
  }
  func.func @transform_1(%arg0: i32, %arg1: i32, %arg2: i32) -> (i32, i32) {
    %c0_i32 = arith.constant 0 : i32
    return %arg2, %arg1 : i32, i32
  }
  func.func @transform_2(%arg0: i32, %arg1: i32, %arg2: i32) -> (i32, i32) {
    %c0_i32 = arith.constant 0 : i32
    %c0_i32_0 = arith.constant 0 : i32
    return %c0_i32, %arg1 : i32, i32
  }
  func.func @transform_3(%arg0: i32, %arg1: i32, %arg2: i32) -> (i32, i32) {
    %c0_i32 = arith.constant 0 : i32
    return %arg0, %arg1 : i32, i32
  }
}

</mosaic_0001>

<llo_original>
// kernel: tpu_custom_call.1
$region0: #{tpu_custom_call.1}
  #allocation0 [shape = 'u32[]', space=smem, size = 0x4, offset = 0x4, fixed_abs, tag = 'smem constant byte address 0x4 - core index']
  #allocation1 [shape = 'u32[72,128]{1,0:T(1,128)}', space=vmem, size = 0x9000, scoped, tag = 'internal scratch']
  #allocation2 [shape = 'f32[64,512]{1,0:T(8,128)}', space=vmem, size = 0x20000, scoped, tag = 'scratch operand']
  %s0 = inlined_call_operand.hbm [shape: bf16[64,128], index: 0, kind: input, shape index: {}]
  %s1 = inlined_call_operand.hbm [shape: bf16[128,512], index: 1, kind: input, shape index: {}]
  %s2 = inlined_call_operand.hbm [shape: f32[1,512], index: 2, kind: input, shape index: {}]
  %s3 = inlined_call_operand.hbm [shape: f32[64,512], index: 3, kind: output, shape index: {}]
  %s4 = sld [smem:[#allocation0]]
  $region42: #{tpu_custom_call.1} parent=0
    _
  %s6 = ssub.s32 1, %s4
  %s7 = scalar_select 0, %s6, %s4
  $region1: #{tpu_custom_call.1} parent=0
    #allocation3 [shape = 'u8[16384]{0}', space=vmem, size = 0x4000, scoped, tag = 'input window, operand 0, single buffered']
    #allocation4 [shape = 's32[1]{0}', space=sflag, size = 0x4, scoped, tag = 'scoped memory for tpu_custom_call.1']
    #allocation5 [shape = 's32[1]{0}', space=sflag, size = 0x4, scoped, tag = 'scoped memory for tpu_custom_call.1']
    #allocation6 [shape = 'u8[131072]{0}', space=vmem, size = 0x20000, scoped, tag = 'input window, operand 1, single buffered']
    #allocation7 [shape = 's32[1]{0}', space=sflag, size = 0x4, scoped, tag = 'scoped memory for tpu_custom_call.1']
    #allocation8 [shape = 'u8[2048]{0}', space=vmem, size = 0x800, scoped, tag = 'input window, operand 2, single buffered']
    #allocation9 [shape = 'u8[131072]{0}', space=vmem, size = 0x20000, scoped, tag = 'output window, operand 0, single buffered']
    %8 = vsyncpa [#allocation4], 0
    %9 = vsyncpa [#allocation7], 0
    %10 = vsyncpa [#allocation5], 0
    // Predicated region
    $region2: #{tpu_custom_call.1} parent=1 // pred_check
      _
    $region3: #{tpu_custom_call.1} parent=1 // pred_check_branch
      %12 = sbr.rel (0) target = $region5
    $region4: #{tpu_custom_call.1} parent=1 // pred_region
      %14 = vsyncadd [#allocation4], 0
      %s15 = sshll.u32 %s0, 4
      %s16 = int_to_ptr.hbm [resolvable:$true] %s15
      %s17 = sshll.u32 [#allocation3], 4
      %s18 = int_to_ptr.vmem [resolvable:$true] %s17
      %23 = dma.hbm_to_vmem [thread:$0]  %s16, 512, %s18, [#allocation4], 64, 64, 4
    $region5: #{tpu_custom_call.1} parent=1 // pred_fallthru
      _
    // Predicated region
    $region6: #{tpu_custom_call.1} parent=1 // pred_check
      _
    $region7: #{tpu_custom_call.1} parent=1 // pred_check_branch
      %25 = sbr.rel (0) target = $region9
    $region8: #{tpu_custom_call.1} parent=1 // pred_region
      %27 = vsyncadd [#allocation7], 0
      %s28 = sshll.u32 %s1, 4
      %s29 = int_to_ptr.hbm [resolvable:$true] %s28
      %s30 = sshll.u32 [#allocation6], 4
      %s31 = int_to_ptr.vmem [resolvable:$true] %s30
      %36 = dma.hbm_to_vmem [thread:$0]  %s29, 4096, %s31, [#allocation7], 256, 256, 16
    $region9: #{tpu_custom_call.1} parent=1 // pred_fallthru
      _
    // Predicated region
    $region10: #{tpu_custom_call.1} parent=1 // pred_check
      _
    $region11: #{tpu_custom_call.1} parent=1 // pred_check_branch
      %38 = sbr.rel (0) target = $region13
    $region12: #{tpu_custom_call.1} parent=1 // pred_region
      %40 = vsyncadd [#allocation7], 0
      %s42 = sshll.u32 %s2, 4
      %s43 = int_to_ptr.hbm [resolvable:$true] %s42
      %s44 = sshll.u32 [#allocation8], 4
      %s45 = int_to_ptr.vmem [resolvable:$true] %s44
      %47 = dma.hbm_to_vmem [thread:$0]  %s43, 64, %s45, [#allocation7]
    $region13: #{tpu_custom_call.1} parent=1 // pred_fallthru
      _
    // Predicated region
    $region14: #{tpu_custom_call.1} parent=1 // pred_check
      _
    $region15: #{tpu_custom_call.1} parent=1 // pred_check_branch
      %49 = sbr.rel (0) target = $region17
    $region16: #{tpu_custom_call.1} parent=1 // pred_region
      %51 = dma.done [#allocation4], 512
    $region17: #{tpu_custom_call.1} parent=1 // pred_fallthru
      _
    // Predicated region
    $region18: #{tpu_custom_call.1} parent=1 // pred_check
      _
    $region19: #{tpu_custom_call.1} parent=1 // pred_check_branch
      %53 = sbr.rel (0) target = $region21
    $region20: #{tpu_custom_call.1} parent=1 // pred_region
      %55 = dma.done [#allocation7], 4096
    $region21: #{tpu_custom_call.1} parent=1 // pred_fallthru
      _
    // Predicated region
    $region22: #{tpu_custom_call.1} parent=1 // pred_check
      _
    $region23: #{tpu_custom_call.1} parent=1 // pred_check_branch
      %57 = sbr.rel (0) target = $region25
    $region24: #{tpu_custom_call.1} parent=1 // pred_region
      %59 = dma.done [#allocation7], 64
    $region25: #{tpu_custom_call.1} parent=1 // pred_fallthru
      _
    %p60 = scmp.eq.s32.totalorder 0, 0
    // Predicated region
    $region26: #{tpu_custom_call.1} parent=1 // pred_check
      %p61 = pneg %p60
    $region27: #{tpu_custom_call.1} parent=1 // pred_check_branch
      %63 = sbr.rel (%p61) target = $region29
    $region28: #{tpu_custom_call.1} parent=1 // pred_region
      %64 = vst [vmem:[#allocation2] sm:$0xff] 0.0
      %65 = vst [vmem:[#allocation2 + $0x8] sm:$0xff] 0.0
      %66 = vst [vmem:[#allocation2 + $0x10] sm:$0xff] 0.0
      %67 = vst [vmem:[#allocation2 + $0x18] sm:$0xff] 0.0
      %68 = vst [vmem:[#allocation2 + $0x20] sm:$0xff] 0.0
      %69 = vst [vmem:[#allocation2 + $0x28] sm:$0xff] 0.0
      %70 = vst [vmem:[#allocation2 + $0x30] sm:$0xff] 0.0
      %71 = vst [vmem:[#allocation2 + $0x38] sm:$0xff] 0.0
      %72 = vst [vmem:[#allocation2 + $0x40] sm:$0xff] 0.0
      %73 = vst [vmem:[#allocation2 + $0x48] sm:$0xff] 0.0
      %74 = vst [vmem:[#allocation2 + $0x50] sm:$0xff] 0.0
      %75 = vst [vmem:[#allocation2 + $0x58] sm:$0xff] 0.0
      %76 = vst [vmem:[#allocation2 + $0x60] sm:$0xff] 0.0
      %77 = vst [vmem:[#allocation2 + $0x68] sm:$0xff] 0.0
      %78 = vst [vmem:[#allocation2 + $0x70] sm:$0xff] 0.0
      %79 = vst [vmem:[#allocation2 + $0x78] sm:$0xff] 0.0
      %80 = vst [vmem:[#allocation2 + $0x80] sm:$0xff] 0.0
      %81 = vst [vmem:[#allocation2 + $0x88] sm:$0xff] 0.0
      %82 = vst [vmem:[#allocation2 + $0x90] sm:$0xff] 0.0
      %83 = vst [vmem:[#allocation2 + $0x98] sm:$0xff] 0.0
      %84 = vst [vmem:[#allocation2 + $0xa0] sm:$0xff] 0.0
      %85 = vst [vmem:[#allocation2 + $0xa8] sm:$0xff] 0.0
      %86 = vst [vmem:[#allocation2 + $0xb0] sm:$0xff] 0.0
      %87 = vst [vmem:[#allocation2 + $0xb8] sm:$0xff] 0.0
      %88 = vst [vmem:[#allocation2 + $0xc0] sm:$0xff] 0.0
      %89 = vst [vmem:[#allocation2 + $0xc8] sm:$0xff] 0.0
      %90 = vst [vmem:[#allocation2 + $0xd0] sm:$0xff] 0.0
      %91 = vst [vmem:[#allocation2 + $0xd8] sm:$0xff] 0.0
      %92 = vst [vmem:[#allocation2 + $0xe0] sm:$0xff] 0.0
      %93 = vst [vmem:[#allocation2 + $0xe8] sm:$0xff] 0.0
      %94 = vst [vmem:[#allocation2 + $0xf0] sm:$0xff] 0.0
      %95 = vst [vmem:[#allocation2 + $0xf8] sm:$0xff] 0.0
    $region29: #{tpu_custom_call.1} parent=1 // pred_fallthru
      _
    %v96 = vld [vmem:[#allocation2] sm:$0xff]
    %v97 = vld [vmem:[#allocation2 + $0x8] sm:$0xff]
    %v98 = vld [vmem:[#allocation2 + $0x10] sm:$0xff]
    %v99 = vld [vmem:[#allocation2 + $0x18] sm:$0xff]
    %v100 = vld [vmem:[#allocation2 + $0x20] sm:$0xff]
    %v101 = vld [vmem:[#allocation2 + $0x28] sm:$0xff]
    %v102 = vld [vmem:[#allocation2 + $0x30] sm:$0xff]
    %v103 = vld [vmem:[#allocation2 + $0x38] sm:$0xff]
    %v104 = vld [vmem:[#allocation2 + $0x40] sm:$0xff]
    %v105 = vld [vmem:[#allocation2 + $0x48] sm:$0xff]
    %v106 = vld [vmem:[#allocation2 + $0x50] sm:$0xff]
    %v107 = vld [vmem:[#allocation2 + $0x58] sm:$0xff]
    %v108 = vld [vmem:[#allocation2 + $0x60] sm:$0xff]
    %v109 = vld [vmem:[#allocation2 + $0x68] sm:$0xff]
    %v110 = vld [vmem:[#allocation2 + $0x70] sm:$0xff]
    %v111 = vld [vmem:[#allocation2 + $0x78] sm:$0xff]
    %v112 = vld [vmem:[#allocation2 + $0x80] sm:$0xff]
    %v113 = vld [vmem:[#allocation2 + $0x88] sm:$0xff]
    %v114 = vld [vmem:[#allocation2 + $0x90] sm:$0xff]
    %v115 = vld [vmem:[#allocation2 + $0x98] sm:$0xff]
    %v116 = vld [vmem:[#allocation2 + $0xa0] sm:$0xff]
    %v117 = vld [vmem:[#allocation2 + $0xa8] sm:$0xff]
    %v118 = vld [vmem:[#allocation2 + $0xb0] sm:$0xff]
    %v119 = vld [vmem:[#allocation2 + $0xb8] sm:$0xff]
    %v120 = vld [vmem:[#allocation2 + $0xc0] sm:$0xff]
    %v121 = vld [vmem:[#allocation2 + $0xc8] sm:$0xff]
    %v122 = vld [vmem:[#allocation2 + $0xd0] sm:$0xff]
    %v123 = vld [vmem:[#allocation2 + $0xd8] sm:$0xff]
    %v124 = vld [vmem:[#allocation2 + $0xe0] sm:$0xff]
    %v125 = vld [vmem:[#allocation2 + $0xe8] sm:$0xff]
    %v126 = vld [vmem:[#allocation2 + $0xf0] sm:$0xff]
    %v127 = vld [vmem:[#allocation2 + $0xf8] sm:$0xff]
    %v128 = vld [vmem:[#allocation3] sm:$0xf]
    %v129 = vld [vmem:[#allocation3 + $0x4] sm:$0xf]
    %v130 = vld [vmem:[#allocation3 + $0x8] sm:$0xf]
    %v131 = vld [vmem:[#allocation3 + $0xc] sm:$0xf]
    %v132 = vld [vmem:[#allocation3 + $0x10] sm:$0xf]
    %v133 = vld [vmem:[#allocation3 + $0x14] sm:$0xf]
    %v134 = vld [vmem:[#allocation3 + $0x18] sm:$0xf]
    %v135 = vld [vmem:[#allocation3 + $0x1c] sm:$0xf]
    %v136 = vld [vmem:[#allocation6] sm:$0xff]
    %v137 = vld [vmem:[#allocation6 + $0x8] sm:$0xff]
    %v138 = vld [vmem:[#allocation6 + $0x10] sm:$0xff]
    %v139 = vld [vmem:[#allocation6 + $0x18] sm:$0xff]
    %v140 = vld [vmem:[#allocation6 + $0x20] sm:$0xff]
    %v141 = vld [vmem:[#allocation6 + $0x28] sm:$0xff]
    %v142 = vld [vmem:[#allocation6 + $0x30] sm:$0xff]
    %v143 = vld [vmem:[#allocation6 + $0x38] sm:$0xff]
    %v144 = vld [vmem:[#allocation6 + $0x40] sm:$0xff]
    %v145 = vld [vmem:[#allocation6 + $0x48] sm:$0xff]
    %v146 = vld [vmem:[#allocation6 + $0x50] sm:$0xff]
    %v147 = vld [vmem:[#allocation6 + $0x58] sm:$0xff]
    %v148 = vld [vmem:[#allocation6 + $0x60] sm:$0xff]
    %v149 = vld [vmem:[#allocation6 + $0x68] sm:$0xff]
    %v150 = vld [vmem:[#allocation6 + $0x70] sm:$0xff]
    %v151 = vld [vmem:[#allocation6 + $0x78] sm:$0xff]
    %v152 = vld [vmem:[#allocation6 + $0x80] sm:$0xff]
    %v153 = vld [vmem:[#allocation6 + $0x88] sm:$0xff]
    %v154 = vld [vmem:[#allocation6 + $0x90] sm:$0xff]
    %v155 = vld [vmem:[#allocation6 + $0x98] sm:$0xff]
    %v156 = vld [vmem:[#allocation6 + $0xa0] sm:$0xff]
    %v157 = vld [vmem:[#allocation6 + $0xa8] sm:$0xff]
    %v158 = vld [vmem:[#allocation6 + $0xb0] sm:$0xff]
    %v159 = vld [vmem:[#allocation6 + $0xb8] sm:$0xff]
    %v160 = vld [vmem:[#allocation6 + $0xc0] sm:$0xff]
    %v161 = vld [vmem:[#allocation6 + $0xc8] sm:$0xff]
    %v162 = vld [vmem:[#allocation6 + $0xd0] sm:$0xff]
    %v163 = vld [vmem:[#allocation6 + $0xd8] sm:$0xff]
    %v164 = vld [vmem:[#allocation6 + $0xe0] sm:$0xff]
    %v165 = vld [vmem:[#allocation6 + $0xe8] sm:$0xff]
    %v166 = vld [vmem:[#allocation6 + $0xf0] sm:$0xff]
    %v167 = vld [vmem:[#allocation6 + $0xf8] sm:$0xff]
    %v176 = vunpack.c.l.b16 %v128
    %v177 = vunpack.c.l.b16 %v129
    %v178 = vunpack.c.l.b16 %v130
    %v179 = vunpack.c.l.b16 %v131
    %v180 = vunpack.c.l.b16 %v132
    %v181 = vunpack.c.l.b16 %v133
    %v182 = vunpack.c.l.b16 %v134
    %v183 = vunpack.c.l.b16 %v135
    %v184 = vpack.c.b16 %v177, %v176
    %v185 = vpack.c.b16 %v179, %v178
    %v186 = vpack.c.b16 %v181, %v180
    %v187 = vpack.c.b16 %v183, %v182
    %v224 = vunpack.c.l.b16 %v136
    %v225 = vunpack.c.h.b16 %v136
    %v226 = vunpack.c.l.b16 %v137
    %v227 = vunpack.c.h.b16 %v137
    %v228 = vunpack.c.l.b16 %v138
    %v229 = vunpack.c.h.b16 %v138
    %v230 = vunpack.c.l.b16 %v139
    %v231 = vunpack.c.h.b16 %v139
    %v232 = vunpack.c.l.b16 %v140
    %v233 = vunpack.c.h.b16 %v140
    %v234 = vunpack.c.l.b16 %v141
    %v235 = vunpack.c.h.b16 %v141
    %v236 = vunpack.c.l.b16 %v142
    %v237 = vunpack.c.h.b16 %v142
    %v238 = vunpack.c.l.b16 %v143
    %v239 = vunpack.c.h.b16 %v143
    %v240 = vunpack.c.l.b16 %v144
    %v241 = vunpack.c.h.b16 %v144
    %v242 = vunpack.c.l.b16 %v145
    %v243 = vunpack.c.h.b16 %v145
    %v244 = vunpack.c.l.b16 %v146
    %v245 = vunpack.c.h.b16 %v146
    %v246 = vunpack.c.l.b16 %v147
    %v247 = vunpack.c.h.b16 %v147
    %v248 = vunpack.c.l.b16 %v148
    %v249 = vunpack.c.h.b16 %v148
    %v250 = vunpack.c.l.b16 %v149
    %v251 = vunpack.c.h.b16 %v149
    %v252 = vunpack.c.l.b16 %v150
    %v253 = vunpack.c.h.b16 %v150
    %v254 = vunpack.c.l.b16 %v151
    %v255 = vunpack.c.h.b16 %v151
    %v256 = vunpack.c.l.b16 %v152
    %v257 = vunpack.c.h.b16 %v152
    %v258 = vunpack.c.l.b16 %v153
    %v259 = vunpack.c.h.b16 %v153
    %v260 = vunpack.c.l.b16 %v154
    %v261 = vunpack.c.h.b16 %v154
    %v262 = vunpack.c.l.b16 %v155
    %v263 = vunpack.c.h.b16 %v155
    %v264 = vunpack.c.l.b16 %v156
    %v265 = vunpack.c.h.b16 %v156
    %v266 = vunpack.c.l.b16 %v157
    %v267 = vunpack.c.h.b16 %v157
    %v268 = vunpack.c.l.b16 %v158
    %v269 = vunpack.c.h.b16 %v158
    %v270 = vunpack.c.l.b16 %v159
    %v271 = vunpack.c.h.b16 %v159
    %v272 = vunpack.c.l.b16 %v160
    %v273 = vunpack.c.h.b16 %v160
    %v274 = vunpack.c.l.b16 %v161
    %v275 = vunpack.c.h.b16 %v161
    %v276 = vunpack.c.l.b16 %v162
    %v277 = vunpack.c.h.b16 %v162
    %v278 = vunpack.c.l.b16 %v163
    %v279 = vunpack.c.h.b16 %v163
    %v280 = vunpack.c.l.b16 %v164
    %v281 = vunpack.c.h.b16 %v164
    %v282 = vunpack.c.l.b16 %v165
    %v283 = vunpack.c.h.b16 %v165
    %v284 = vunpack.c.l.b16 %v166
    %v285 = vunpack.c.h.b16 %v166
    %v286 = vunpack.c.l.b16 %v167
    %v287 = vunpack.c.h.b16 %v167
    %v288 = vpack.c.b16 %v228, %v224
    %v289 = vpack.c.b16 %v229, %v225
    %v290 = vpack.c.b16 %v230, %v226
    %v291 = vpack.c.b16 %v231, %v227
    %v292 = vpack.c.b16 %v236, %v232
    %v293 = vpack.c.b16 %v237, %v233
    %v294 = vpack.c.b16 %v238, %v234
    %v295 = vpack.c.b16 %v239, %v235
    %v296 = vpack.c.b16 %v244, %v240
    %v297 = vpack.c.b16 %v245, %v241
    %v298 = vpack.c.b16 %v246, %v242
    %v299 = vpack.c.b16 %v247, %v243
    %v300 = vpack.c.b16 %v252, %v248
    %v301 = vpack.c.b16 %v253, %v249
    %v302 = vpack.c.b16 %v254, %v250
    %v303 = vpack.c.b16 %v255, %v251
    %v304 = vpack.c.b16 %v260, %v256
    %v305 = vpack.c.b16 %v261, %v257
    %v306 = vpack.c.b16 %v262, %v258
    %v307 = vpack.c.b16 %v263, %v259
    %v308 = vpack.c.b16 %v268, %v264
    %v309 = vpack.c.b16 %v269, %v265
    %v310 = vpack.c.b16 %v270, %v266
    %v311 = vpack.c.b16 %v271, %v267
    %v312 = vpack.c.b16 %v276, %v272
    %v313 = vpack.c.b16 %v277, %v273
    %v314 = vpack.c.b16 %v278, %v274
    %v315 = vpack.c.b16 %v279, %v275
    %v316 = vpack.c.b16 %v284, %v280
    %v317 = vpack.c.b16 %v285, %v281
    %v318 = vpack.c.b16 %v286, %v282
    %v319 = vpack.c.b16 %v287, %v283
    %352 = vmatpush.bf16.msra.mxu0 %v316
    %353 = vmatpush.bf16.msra.mxu0 %v312
    %354 = vmatpush.bf16.msra.mxu0 %v308
    %355 = vmatpush.bf16.msra.mxu0 %v304
    %356 = vmatpush.bf16.msra.mxu0 %v300
    %357 = vmatpush.bf16.msra.mxu0 %v296
    %358 = vmatpush.bf16.msra.mxu0 %v292
    %359 = vmatpush.bf16.msra.mxu0 %v288
    %360 = vmatmul.bf16.gmra.mxu0 %v184
    %v361 = vpop.f32.mrf.mxu0
    %v362 = vadd.f32 0.0, %v361
    %v363 = vpop.f32.mrf.mxu0
    %v364 = vadd.f32 0.0, %v363
    %365 = vmatmul.bf16.gmra.mxu0 %v185
    %v366 = vpop.f32.mrf.mxu0
    %v367 = vadd.f32 0.0, %v366
    %v368 = vpop.f32.mrf.mxu0
    %v369 = vadd.f32 0.0, %v368
    %370 = vmatmul.bf16.gmra.mxu0 %v186
    %v371 = vpop.f32.mrf.mxu0
    %v372 = vadd.f32 0.0, %v371
    %v373 = vpop.f32.mrf.mxu0
    %v374 = vadd.f32 0.0, %v373
    %375 = vmatmul.bf16.gmra.mxu0 %v187
    %v376 = vpop.f32.mrf.mxu0
    %v377 = vadd.f32 0.0, %v376
    %v378 = vpop.f32.mrf.mxu0
    %v379 = vadd.f32 0.0, %v378
    %380 = vdwg.mxu0
    %381 = vmatpush.bf16.msra.mxu0 %v317
    %382 = vmatpush.bf16.msra.mxu0 %v313
    %383 = vmatpush.bf16.msra.mxu0 %v309
    %384 = vmatpush.bf16.msra.mxu0 %v305
    %385 = vmatpush.bf16.msra.mxu0 %v301
    %386 = vmatpush.bf16.msra.mxu0 %v297
    %387 = vmatpush.bf16.msra.mxu0 %v293
    %388 = vmatpush.bf16.msra.mxu0 %v289
    %389 = vmatmul.bf16.gmra.mxu0 %v184
    %v390 = vpop.f32.mrf.mxu0
    %v391 = vadd.f32 0.0, %v390
    %v392 = vpop.f32.mrf.mxu0
    %v393 = vadd.f32 0.0, %v392
    %394 = vmatmul.bf16.gmra.mxu0 %v185
    %v395 = vpop.f32.mrf.mxu0
    %v396 = vadd.f32 0.0, %v395
    %v397 = vpop.f32.mrf.mxu0
    %v398 = vadd.f32 0.0, %v397
    %399 = vmatmul.bf16.gmra.mxu0 %v186
    %v400 = vpop.f32.mrf.mxu0
    %v401 = vadd.f32 0.0, %v400
    %v402 = vpop.f32.mrf.mxu0
    %v403 = vadd.f32 0.0, %v402
    %404 = vmatmul.bf16.gmra.mxu0 %v187
    %v405 = vpop.f32.mrf.mxu0
    %v406 = vadd.f32 0.0, %v405
    %v407 = vpop.f32.mrf.mxu0
    %v408 = vadd.f32 0.0, %v407
    %409 = vdwg.mxu0
    %410 = vmatpush.bf16.msra.mxu0 %v318
    %411 = vmatpush.bf16.msra.mxu0 %v314
    %412 = vmatpush.bf16.msra.mxu0 %v310
    %413 = vmatpush.bf16.msra.mxu0 %v306
    %414 = vmatpush.bf16.msra.mxu0 %v302
    %415 = vmatpush.bf16.msra.mxu0 %v298
    %416 = vmatpush.bf16.msra.mxu0 %v294
    %417 = vmatpush.bf16.msra.mxu0 %v290
    %418 = vmatmul.bf16.gmra.mxu0 %v184
    %v419 = vpop.f32.mrf.mxu0
    %v420 = vadd.f32 0.0, %v419
    %v421 = vpop.f32.mrf.mxu0
    %v422 = vadd.f32 0.0, %v421
    %423 = vmatmul.bf16.gmra.mxu0 %v185
    %v424 = vpop.f32.mrf.mxu0
    %v425 = vadd.f32 0.0, %v424
    %v426 = vpop.f32.mrf.mxu0
    %v427 = vadd.f32 0.0, %v426
    %428 = vmatmul.bf16.gmra.mxu0 %v186
    %v429 = vpop.f32.mrf.mxu0
    %v430 = vadd.f32 0.0, %v429
    %v431 = vpop.f32.mrf.mxu0
    %v432 = vadd.f32 0.0, %v431
    %433 = vmatmul.bf16.gmra.mxu0 %v187
    %v434 = vpop.f32.mrf.mxu0
    %v435 = vadd.f32 0.0, %v434
    %v436 = vpop.f32.mrf.mxu0
    %v437 = vadd.f32 0.0, %v436
    %438 = vdwg.mxu0
    %439 = vmatpush.bf16.msra.mxu0 %v319
    %440 = vmatpush.bf16.msra.mxu0 %v315
    %441 = vmatpush.bf16.msra.mxu0 %v311
    %442 = vmatpush.bf16.msra.mxu0 %v307
    %443 = vmatpush.bf16.msra.mxu0 %v303
    %444 = vmatpush.bf16.msra.mxu0 %v299
    %445 = vmatpush.bf16.msra.mxu0 %v295
    %446 = vmatpush.bf16.msra.mxu0 %v291
    %447 = vmatmul.bf16.gmra.mxu0 %v184
    %v448 = vpop.f32.mrf.mxu0
    %v449 = vadd.f32 0.0, %v448
    %v450 = vpop.f32.mrf.mxu0
    %v451 = vadd.f32 0.0, %v450
    %452 = vmatmul.bf16.gmra.mxu0 %v185
    %v453 = vpop.f32.mrf.mxu0
    %v454 = vadd.f32 0.0, %v453
    %v455 = vpop.f32.mrf.mxu0
    %v456 = vadd.f32 0.0, %v455
    %457 = vmatmul.bf16.gmra.mxu0 %v186
    %v458 = vpop.f32.mrf.mxu0
    %v459 = vadd.f32 0.0, %v458
    %v460 = vpop.f32.mrf.mxu0
    %v461 = vadd.f32 0.0, %v460
    %462 = vmatmul.bf16.gmra.mxu0 %v187
    %v463 = vpop.f32.mrf.mxu0
    %v464 = vadd.f32 0.0, %v463
    %v465 = vpop.f32.mrf.mxu0
    %v466 = vadd.f32 0.0, %v465
    %467 = vdwg.mxu0
    %v468 = vadd.f32 %v96, %v362
    %v469 = vadd.f32 %v97, %v391
    %v470 = vadd.f32 %v98, %v420
    %v471 = vadd.f32 %v99, %v449
    %v472 = vadd.f32 %v100, %v364
    %v473 = vadd.f32 %v101, %v393
    %v474 = vadd.f32 %v102, %v422
    %v475 = vadd.f32 %v103, %v451
    %v476 = vadd.f32 %v104, %v367
    %v477 = vadd.f32 %v105, %v396
    %v478 = vadd.f32 %v106, %v425
    %v479 = vadd.f32 %v107, %v454
    %v480 = vadd.f32 %v108, %v369
    %v481 = vadd.f32 %v109, %v398
    %v482 = vadd.f32 %v110, %v427
    %v483 = vadd.f32 %v111, %v456
    %v484 = vadd.f32 %v112, %v372
    %v485 = vadd.f32 %v113, %v401
    %v486 = vadd.f32 %v114, %v430
    %v487 = vadd.f32 %v115, %v459
    %v488 = vadd.f32 %v116, %v374
    %v489 = vadd.f32 %v117, %v403
    %v490 = vadd.f32 %v118, %v432
    %v491 = vadd.f32 %v119, %v461
    %v492 = vadd.f32 %v120, %v377
    %v493 = vadd.f32 %v121, %v406
    %v494 = vadd.f32 %v122, %v435
    %v495 = vadd.f32 %v123, %v464
    %v496 = vadd.f32 %v124, %v379
    %v497 = vadd.f32 %v125, %v408
    %v498 = vadd.f32 %v126, %v437
    %v499 = vadd.f32 %v127, %v466
    %500 = vst [vmem:[#allocation2] sm:$0xff] %v468
    %501 = vst [vmem:[#allocation2 + $0x8] sm:$0xff] %v469
    %502 = vst [vmem:[#allocation2 + $0x10] sm:$0xff] %v470
    %503 = vst [vmem:[#allocation2 + $0x18] sm:$0xff] %v471
    %504 = vst [vmem:[#allocation2 + $0x20] sm:$0xff] %v472
    %505 = vst [vmem:[#allocation2 + $0x28] sm:$0xff] %v473
    %506 = vst [vmem:[#allocation2 + $0x30] sm:$0xff] %v474
    %507 = vst [vmem:[#allocation2 + $0x38] sm:$0xff] %v475
    %508 = vst [vmem:[#allocation2 + $0x40] sm:$0xff] %v476
    %509 = vst [vmem:[#allocation2 + $0x48] sm:$0xff] %v477
    %510 = vst [vmem:[#allocation2 + $0x50] sm:$0xff] %v478
    %511 = vst [vmem:[#allocation2 + $0x58] sm:$0xff] %v479
    %512 = vst [vmem:[#allocation2 + $0x60] sm:$0xff] %v480
    %513 = vst [vmem:[#allocation2 + $0x68] sm:$0xff] %v481
    %514 = vst [vmem:[#allocation2 + $0x70] sm:$0xff] %v482
    %515 = vst [vmem:[#allocation2 + $0x78] sm:$0xff] %v483
    %516 = vst [vmem:[#allocation2 + $0x80] sm:$0xff] %v484
    %517 = vst [vmem:[#allocation2 + $0x88] sm:$0xff] %v485
    %518 = vst [vmem:[#allocation2 + $0x90] sm:$0xff] %v486
    %519 = vst [vmem:[#allocation2 + $0x98] sm:$0xff] %v487
    %520 = vst [vmem:[#allocation2 + $0xa0] sm:$0xff] %v488
    %521 = vst [vmem:[#allocation2 + $0xa8] sm:$0xff] %v489
    %522 = vst [vmem:[#allocation2 + $0xb0] sm:$0xff] %v490
    %523 = vst [vmem:[#allocation2 + $0xb8] sm:$0xff] %v491
    %524 = vst [vmem:[#allocation2 + $0xc0] sm:$0xff] %v492
    %525 = vst [vmem:[#allocation2 + $0xc8] sm:$0xff] %v493
    %526 = vst [vmem:[#allocation2 + $0xd0] sm:$0xff] %v494
    %527 = vst [vmem:[#allocation2 + $0xd8] sm:$0xff] %v495
    %528 = vst [vmem:[#allocation2 + $0xe0] sm:$0xff] %v496
    %529 = vst [vmem:[#allocation2 + $0xe8] sm:$0xff] %v497
    %530 = vst [vmem:[#allocation2 + $0xf0] sm:$0xff] %v498
    %531 = vst [vmem:[#allocation2 + $0xf8] sm:$0xff] %v499
    // Predicated region
    $region30: #{tpu_custom_call.1} parent=1 // pred_check
      %p532 = pneg %p60
    $region31: #{tpu_custom_call.1} parent=1 // pred_check_branch
      %534 = sbr.rel (%p532) target = $region33
    $region32: #{tpu_custom_call.1} parent=1 // pred_region
      %v535 = vld [vmem:[#allocation2] sm:$0xff]
      %v536 = vld [vmem:[#allocation2 + $0x8] sm:$0xff]
      %v537 = vld [vmem:[#allocation2 + $0x10] sm:$0xff]
      %v538 = vld [vmem:[#allocation2 + $0x18] sm:$0xff]
      %v539 = vld [vmem:[#allocation2 + $0x20] sm:$0xff]
      %v540 = vld [vmem:[#allocation2 + $0x28] sm:$0xff]
      %v541 = vld [vmem:[#allocation2 + $0x30] sm:$0xff]
      %v542 = vld [vmem:[#allocation2 + $0x38] sm:$0xff]
      %v543 = vld [vmem:[#allocation2 + $0x40] sm:$0xff]
      %v544 = vld [vmem:[#allocation2 + $0x48] sm:$0xff]
      %v545 = vld [vmem:[#allocation2 + $0x50] sm:$0xff]
      %v546 = vld [vmem:[#allocation2 + $0x58] sm:$0xff]
      %v547 = vld [vmem:[#allocation2 + $0x60] sm:$0xff]
      %v548 = vld [vmem:[#allocation2 + $0x68] sm:$0xff]
      %v549 = vld [vmem:[#allocation2 + $0x70] sm:$0xff]
      %v550 = vld [vmem:[#allocation2 + $0x78] sm:$0xff]
      %v551 = vld [vmem:[#allocation2 + $0x80] sm:$0xff]
      %v552 = vld [vmem:[#allocation2 + $0x88] sm:$0xff]
      %v553 = vld [vmem:[#allocation2 + $0x90] sm:$0xff]
      %v554 = vld [vmem:[#allocation2 + $0x98] sm:$0xff]
      %v555 = vld [vmem:[#allocation2 + $0xa0] sm:$0xff]
      %v556 = vld [vmem:[#allocation2 + $0xa8] sm:$0xff]
      %v557 = vld [vmem:[#allocation2 + $0xb0] sm:$0xff]
      %v558 = vld [vmem:[#allocation2 + $0xb8] sm:$0xff]
      %v559 = vld [vmem:[#allocation2 + $0xc0] sm:$0xff]
      %v560 = vld [vmem:[#allocation2 + $0xc8] sm:$0xff]
      %v561 = vld [vmem:[#allocation2 + $0xd0] sm:$0xff]
      %v562 = vld [vmem:[#allocation2 + $0xd8] sm:$0xff]
      %v563 = vld [vmem:[#allocation2 + $0xe0] sm:$0xff]
      %v564 = vld [vmem:[#allocation2 + $0xe8] sm:$0xff]
      %v565 = vld [vmem:[#allocation2 + $0xf0] sm:$0xff]
      %v566 = vld [vmem:[#allocation2 + $0xf8] sm:$0xff]
      %v567 = vld [vmem:[#allocation8] sm:$0xf]
      %v569 = vperm.slane %v567, 0
      %v570 = vperm.slane %v567, 1
      %v571 = vperm.slane %v567, 2
      %v572 = vperm.slane %v567, 3
      %v577 = vadd.f32 %v535, %v569
      %v578 = vadd.f32 %v536, %v570
      %v579 = vadd.f32 %v537, %v571
      %v580 = vadd.f32 %v538, %v572
      %v581 = vadd.f32 %v539, %v569
      %v582 = vadd.f32 %v540, %v570
      %v583 = vadd.f32 %v541, %v571
      %v584 = vadd.f32 %v542, %v572
      %v585 = vadd.f32 %v543, %v569
      %v586 = vadd.f32 %v544, %v570
      %v587 = vadd.f32 %v545, %v571
      %v588 = vadd.f32 %v546, %v572
      %v589 = vadd.f32 %v547, %v569
      %v590 = vadd.f32 %v548, %v570
      %v591 = vadd.f32 %v549, %v571
      %v592 = vadd.f32 %v550, %v572
      %v593 = vadd.f32 %v551, %v569
      %v594 = vadd.f32 %v552, %v570
      %v595 = vadd.f32 %v553, %v571
      %v596 = vadd.f32 %v554, %v572
      %v597 = vadd.f32 %v555, %v569
      %v598 = vadd.f32 %v556, %v570
      %v599 = vadd.f32 %v557, %v571
      %v600 = vadd.f32 %v558, %v572
      %v601 = vadd.f32 %v559, %v569
      %v602 = vadd.f32 %v560, %v570
      %v603 = vadd.f32 %v561, %v571
      %v604 = vadd.f32 %v562, %v572
      %v605 = vadd.f32 %v563, %v569
      %v606 = vadd.f32 %v564, %v570
      %v607 = vadd.f32 %v565, %v571
      %v608 = vadd.f32 %v566, %v572
      %609 = vst [vmem:[#allocation9] sm:$0xff] %v577
      %610 = vst [vmem:[#allocation9 + $0x8] sm:$0xff] %v578
      %611 = vst [vmem:[#allocation9 + $0x10] sm:$0xff] %v579
      %612 = vst [vmem:[#allocation9 + $0x18] sm:$0xff] %v580
      %613 = vst [vmem:[#allocation9 + $0x20] sm:$0xff] %v581
      %614 = vst [vmem:[#allocation9 + $0x28] sm:$0xff] %v582
      %615 = vst [vmem:[#allocation9 + $0x30] sm:$0xff] %v583
      %616 = vst [vmem:[#allocation9 + $0x38] sm:$0xff] %v584
      %617 = vst [vmem:[#allocation9 + $0x40] sm:$0xff] %v585
      %618 = vst [vmem:[#allocation9 + $0x48] sm:$0xff] %v586
      %619 = vst [vmem:[#allocation9 + $0x50] sm:$0xff] %v587
      %620 = vst [vmem:[#allocation9 + $0x58] sm:$0xff] %v588
      %621 = vst [vmem:[#allocation9 + $0x60] sm:$0xff] %v589
      %622 = vst [vmem:[#allocation9 + $0x68] sm:$0xff] %v590
      %623 = vst [vmem:[#allocation9 + $0x70] sm:$0xff] %v591
      %624 = vst [vmem:[#allocation9 + $0x78] sm:$0xff] %v592
      %625 = vst [vmem:[#allocation9 + $0x80] sm:$0xff] %v593
      %626 = vst [vmem:[#allocation9 + $0x88] sm:$0xff] %v594
      %627 = vst [vmem:[#allocation9 + $0x90] sm:$0xff] %v595
      %628 = vst [vmem:[#allocation9 + $0x98] sm:$0xff] %v596
      %629 = vst [vmem:[#allocation9 + $0xa0] sm:$0xff] %v597
      %630 = vst [vmem:[#allocation9 + $0xa8] sm:$0xff] %v598
      %631 = vst [vmem:[#allocation9 + $0xb0] sm:$0xff] %v599
      %632 = vst [vmem:[#allocation9 + $0xb8] sm:$0xff] %v600
      %633 = vst [vmem:[#allocation9 + $0xc0] sm:$0xff] %v601
      %634 = vst [vmem:[#allocation9 + $0xc8] sm:$0xff] %v602
      %635 = vst [vmem:[#allocation9 + $0xd0] sm:$0xff] %v603
      %636 = vst [vmem:[#allocation9 + $0xd8] sm:$0xff] %v604
      %637 = vst [vmem:[#allocation9 + $0xe0] sm:$0xff] %v605
      %638 = vst [vmem:[#allocation9 + $0xe8] sm:$0xff] %v606
      %639 = vst [vmem:[#allocation9 + $0xf0] sm:$0xff] %v607
      %640 = vst [vmem:[#allocation9 + $0xf8] sm:$0xff] %v608
    $region33: #{tpu_custom_call.1} parent=1 // pred_fallthru
      _
    // Predicated region
    $region34: #{tpu_custom_call.1} parent=1 // pred_check
      _
    $region35: #{tpu_custom_call.1} parent=1 // pred_check_branch
      %642 = sbr.rel (0) target = $region37
    $region36: #{tpu_custom_call.1} parent=1 // pred_region
      %644 = vsyncadd [#allocation5], 0
      %s645 = sshll.u32 [#allocation9], 4
      %s646 = int_to_ptr.vmem [resolvable:$true] %s645
      %s647 = sshll.u32 %s3, 4
      %s648 = int_to_ptr.hbm [resolvable:$true] %s647
      %653 = dma.vmem_to_hbm [thread:$0]  %s646, 4096, %s648, [#allocation5], 512, 512, 32
    $region37: #{tpu_custom_call.1} parent=1 // pred_fallthru
      _
    // Predicated region
    $region38: #{tpu_custom_call.1} parent=1 // pred_check
      _
    $region39: #{tpu_custom_call.1} parent=1 // pred_check_branch
      %655 = sbr.rel (0) target = $region41
    $region40: #{tpu_custom_call.1} parent=1 // pred_region
      %657 = dma.done [#allocation5], 4096
    $region41: #{tpu_custom_call.1} parent=1 // pred_fallthru
      _
    %658 = vsyncpa [#allocation4], 1
    %659 = vsyncpa [#allocation7], 1
    %660 = vsyncpa [#allocation5], 1

</llo_original>
